<compile_context>
chip_gen: v7x
topology: tpu7x:2x2x1
jax: 0.10.0
libtpu: 0.0.40
codegen_flags: <defaults>
</compile_context>

<pallas_src>
import functools
import math

import jax
import jax.numpy as jnp
from jax import lax
from jax.experimental import pallas as pl
from jax.experimental.pallas import tpu as pltpu


def _pick_tile(dim, target, quantum):
    """Largest tile <= target that divides dim and is a multiple of quantum."""
    if dim <= target:
        return dim
    if dim % target == 0:
        return target
    t = (target // quantum) * quantum
    while t >= quantum:
        if dim % t == 0:
            return t
        t -= quantum
    # TODO(synk): pad the array instead of falling back to one full-extent block.
    return dim


def _mxu_dtype_for(dtype):
    return jnp.bfloat16 if dtype == jnp.bfloat16 else jnp.float32


# ----------------------------------------------------------------------------
# Kernel 1: tiled GPT-2 Conv1D  (y = x @ W + b), used for c_attn.
# ----------------------------------------------------------------------------
def _conv1d_kernel(x_ref, w_ref, b_ref, o_ref, acc_ref, *, mxu_dtype):
    @pl.when(pl.program_id(2) == 0)
    def _():
        acc_ref[...] = jnp.zeros_like(acc_ref)

    acc_ref[...] += jnp.dot(x_ref[...].astype(mxu_dtype),
                            w_ref[...].astype(mxu_dtype),
                            preferred_element_type=jnp.float32)

    @pl.when(pl.program_id(2) == pl.num_programs(2) - 1)
    def _():
        # Bias is added exactly once, in the K epilogue.
        o_ref[...] = (acc_ref[...] + b_ref[...].astype(jnp.float32)).astype(o_ref.dtype)


def conv1d(x2d, w, b, *, tm=256, tn=512, tk=512, mxu_dtype=None):
    """x2d: [M, K], w: [K, N], b: [N] -> [M, N]  (y = x @ W + b)."""
    M, K = x2d.shape
    N = w.shape[1]
    if mxu_dtype is None:
        mxu_dtype = _mxu_dtype_for(x2d.dtype)
    tm = _pick_tile(M, tm, 8)
    tn = _pick_tile(N, tn, 128)
    tk = _pick_tile(K, tk, 128)
    grid = (M // tm, N // tn, K // tk)  # reduction axis (K) last
    kernel = functools.partial(_conv1d_kernel, mxu_dtype=mxu_dtype)
    return pl.pallas_call(
        kernel,
        out_shape=jax.ShapeDtypeStruct((M, N), x2d.dtype),
        grid=grid,
        in_specs=[
            pl.BlockSpec((tm, tk), lambda i, j, k: (i, k)),
            pl.BlockSpec((tk, tn), lambda i, j, k: (k, j)),
            pl.BlockSpec((1, tn), lambda i, j, k: (0, j)),
        ],
        out_specs=pl.BlockSpec((tm, tn), lambda i, j, k: (i, j)),
        scratch_shapes=[pltpu.VMEM((tm, tn), jnp.float32)],
        compiler_params=pltpu.CompilerParams(
            dimension_semantics=("parallel", "parallel", "arbitrary"),
            vmem_limit_bytes=32 * 1024 * 1024),
    )(x2d, w, b.reshape(1, N))


# ----------------------------------------------------------------------------
# Kernel 2: fused causal flash attention + c_proj.
# grid = (batch, q_tiles, heads); heads is an "arbitrary" accumulation axis.
# ----------------------------------------------------------------------------
def _attn_proj_kernel(q_ref, k_ref, v_ref, wp_ref, bp_ref, o_ref, acc_ref, *,
                      tq, kv_tile, head_dim, scale, mask_value, mxu_dtype):
    qi = pl.program_id(1)
    h = pl.program_id(2)
    f32 = jnp.float32

    @pl.when(h == 0)
    def _():
        acc_ref[...] = jnp.zeros_like(acc_ref)

    T = k_ref.shape[0]
    n_kv_total = T // kv_tile
    q_start = qi * tq
    # Causal bound: only KV tiles touching [0, q_start + tq) are processed.
    n_kv = jnp.minimum((q_start + tq + kv_tile - 1) // kv_tile, n_kv_total)

    q = (q_ref[...].astype(f32) * scale).astype(mxu_dtype)          # (tq, D)

    # Hoisted iotas for the causal mask (JAX does not CSE broadcast_in_dim).
    row = lax.broadcasted_iota(jnp.int32, (tq, kv_tile), 0) + q_start
    col0 = lax.broadcasted_iota(jnp.int32, (tq, kv_tile), 1)

    def body(c, carry):
        m, l, acc = carry
        k0 = pl.multiple_of(c * kv_tile, kv_tile)
        k_c = k_ref[pl.ds(k0, kv_tile), :]                           # (tkv, D)
        v_c = v_ref[pl.ds(k0, kv_tile), :]

        # q @ k^T without materializing a transpose (contract last dims).
        s = lax.dot_general(q, k_c.astype(mxu_dtype),
                            (((1,), (1,)), ((), ())),
                            preferred_element_type=f32)              # (tq, tkv)
        s = jnp.where(row >= col0 + k0, s, mask_value)               # causal

        m_new = jnp.maximum(m, jnp.max(s, axis=-1, keepdims=True))
        alpha = jnp.exp(m - m_new)
        p = jnp.exp(s - m_new)
        l = alpha * l + jnp.sum(p, axis=-1, keepdims=True)
        acc = alpha * acc + lax.dot_general(
            p.astype(mxu_dtype), v_c.astype(mxu_dtype),
            (((1,), (0,)), ((), ())), preferred_element_type=f32)
        return m_new, l, acc

    m0 = jnp.full((tq, 1), -jnp.inf, f32)
    l0 = jnp.zeros((tq, 1), f32)
    a0 = jnp.zeros((tq, head_dim), f32)
    _, l, acc = lax.fori_loop(0, n_kv, body, (m0, l0, a0))

    attn_h = acc * pl.reciprocal(l, approx=True)                     # (tq, D)

    # Fused c_proj: accumulate this head's slab of the output projection.
    acc_ref[...] += lax.dot_general(
        attn_h.astype(mxu_dtype), wp_ref[...].astype(mxu_dtype),
        (((1,), (0,)), ((), ())), preferred_element_type=f32)

    @pl.when(h == pl.num_programs(2) - 1)
    def _():
        o_ref[...] = (acc_ref[...] + bp_ref[...].astype(f32)).astype(o_ref.dtype)


def causal_attention_proj(q_heads, k_heads, v_heads, w_proj, b_proj, *,
                          tq=256, kv_tile=512, mxu_dtype=None):
    """q/k/v: [B, H, T, D]; w_proj: [E, E], b_proj: [E] -> [B, T, E]."""
    B, H, T, D = q_heads.shape
    E = H * D
    if mxu_dtype is None:
        mxu_dtype = _mxu_dtype_for(q_heads.dtype)
    tq = _pick_tile(T, tq, 8)
    kv_tile = _pick_tile(T, kv_tile, 128)
    scale = 1.0 / math.sqrt(float(D))
    mask_value = float(jnp.finfo(jnp.float32).min)
    # TODO(synk): scale_attn_by_inverse_layer_idx / reorder_and_upcast_attn are
    # config-off by default and not modeled here (fold an extra factor into
    # `scale` if needed).
    kernel = functools.partial(
        _attn_proj_kernel, tq=tq, kv_tile=kv_tile, head_dim=D, scale=scale,
        mask_value=mask_value, mxu_dtype=mxu_dtype)
    grid = (B, T // tq, H)  # heads innermost: c_proj accumulation axis
    return pl.pallas_call(
        kernel,
        out_shape=jax.ShapeDtypeStruct((B, T, E), q_heads.dtype),
        grid=grid,
        in_specs=[
            pl.BlockSpec((None, None, tq, D), lambda b, qi, h: (b, h, qi, 0)),
            pl.BlockSpec((None, None, T, D), lambda b, qi, h: (b, h, 0, 0)),
            pl.BlockSpec((None, None, T, D), lambda b, qi, h: (b, h, 0, 0)),
            pl.BlockSpec((D, E), lambda b, qi, h: (h, 0)),   # w_c_proj row slab
            pl.BlockSpec((1, E), lambda b, qi, h: (0, 0)),   # b_c_proj resident
        ],
        out_specs=pl.BlockSpec((None, tq, E), lambda b, qi, h: (b, qi, 0)),
        scratch_shapes=[pltpu.VMEM((tq, E), jnp.float32)],
        compiler_params=pltpu.CompilerParams(
            dimension_semantics=("parallel", "parallel", "arbitrary"),
            vmem_limit_bytes=32 * 1024 * 1024),
    )(q_heads, k_heads, v_heads, w_proj, b_proj.reshape(1, E))


# ----------------------------------------------------------------------------
# Full forward pass (self-attention, use_cache=True => returns `present`).
# ----------------------------------------------------------------------------
def gpt2_attention_forward(hidden_states, w_c_attn, b_c_attn, w_c_proj, b_c_proj,
                           *, num_heads, mxu_dtype=None):
    B, T, E = hidden_states.shape
    D = E // num_heads

    # c_attn projection -> packed qkv.
    qkv = conv1d(hidden_states.reshape(B * T, E), w_c_attn, b_c_attn,
                 mxu_dtype=mxu_dtype)
    qkv = qkv.reshape(B, T, 3 * E)

    # Split heads once in XLA; k/v in [B, H, T, D] double as `present`
    # (use_cache=True) and as the attention kernel's aligned K/V inputs.
    q = qkv[:, :, :E].reshape(B, T, num_heads, D).transpose(0, 2, 1, 3)
    k = qkv[:, :, E:2 * E].reshape(B, T, num_heads, D).transpose(0, 2, 1, 3)
    v = qkv[:, :, 2 * E:].reshape(B, T, num_heads, D).transpose(0, 2, 1, 3)
    present = (k, v)

    # Fused causal flash attention + c_proj.
    out = causal_attention_proj(q, k, v, w_c_proj, b_c_proj, mxu_dtype=mxu_dtype)

    # TODO(synk): attn_dropout / resid_dropout are identity in eval mode; omitted.
    # TODO(synk): layer_past concat, attention_mask/head_mask, cross-attention
    # and output_attentions (full attn_weights) are not modeled by this kernel.
    return out, present


# ----------------------------------------------------------------------------
# Pure-JAX reference (mirrors eager_attention_forward) for correctness check.
# ----------------------------------------------------------------------------
def _reference(hidden_states, w_c_attn, b_c_attn, w_c_proj, b_c_proj, *, num_heads):
    B, T, E = hidden_states.shape
    D = E // num_heads
    qkv = hidden_states @ w_c_attn + b_c_attn
    q, k, v = jnp.split(qkv, 3, axis=-1)
    q = q.reshape(B, T, num_heads, D).transpose(0, 2, 1, 3)
    k = k.reshape(B, T, num_heads, D).transpose(0, 2, 1, 3)
    v = v.reshape(B, T, num_heads, D).transpose(0, 2, 1, 3)
    s = jnp.einsum("bhqd,bhkd->bhqk", q, k) / jnp.sqrt(jnp.float32(D))
    causal = jnp.tril(jnp.ones((T, T), dtype=bool))
    s = jnp.where(causal[None, None], s, jnp.finfo(s.dtype).min)
    p = jax.nn.softmax(s, axis=-1)
    o = jnp.einsum("bhqk,bhkd->bhqd", p, v)
    o = o.transpose(0, 2, 1, 3).reshape(B, T, E)
    return o @ w_c_proj + b_c_proj


if __name__ == "__main__":
    B, T, E, H = 2, 8, 32, 4  # batch, seq, hidden_size, num_attention_heads

    key = jax.random.PRNGKey(0)
    k1, k2, k3, k4, k5 = jax.random.split(key, 5)
    hidden = jax.random.normal(k1, (B, T, E), jnp.float32)
    # Conv1D weights: c_attn (E, 3E), c_proj (E, E); deterministic init.
    w_c_attn = jax.random.normal(k2, (E, 3 * E), jnp.float32) * 0.02
    b_c_attn = jax.random.normal(k3, (3 * E,), jnp.float32) * 0.02
    w_c_proj = jax.random.normal(k4, (E, E), jnp.float32) * 0.02
    b_c_proj = jax.random.normal(k5, (E,), jnp.float32) * 0.02

    out, (present_k, present_v) = gpt2_attention_forward(
        hidden, w_c_attn, b_c_attn, w_c_proj, b_c_proj, num_heads=H
    )
    out = jax.block_until_ready(out)

    ref = _reference(hidden, w_c_attn, b_c_attn, w_c_proj, b_c_proj, num_heads=H)
    assert out.shape == (B, T, E)
    assert present_k.shape == (B, H, T, E // H)
    assert present_v.shape == (B, H, T, E // H)
    assert jnp.allclose(out, ref, atol=2e-3, rtol=2e-3), "mismatch vs reference"

    print("KERNEL_OK")
</pallas_src>

<mosaic_0001>
module attributes {stable_mosaic.version = 11 : i64} {
  func.func @_conv1d_kernel(%arg0: i32, %arg1: i32, %arg2: i32, %arg3: memref<16x32xf32, #tpu.memory_space<vmem>>, %arg4: memref<32x96xf32, #tpu.memory_space<vmem>>, %arg5: memref<1x96xf32, #tpu.memory_space<vmem>>, %arg6: memref<16x96xf32, #tpu.memory_space<vmem>>, %arg7: memref<16x96xf32, #tpu.memory_space<vmem>>) attributes {dimension_semantics = [#tpu.dimension_semantics<parallel>, #tpu.dimension_semantics<parallel>, #tpu.dimension_semantics<arbitrary>], iteration_bounds = array<i64: 1, 1, 1>, scalar_prefetch = 0 : i64, scratch_operands = 1 : i64, tpu.core_type = #tpu.core_type<tc>, window_params = [{transform_indices = @transform_0, window_bounds = array<i64: 16, 32>}, {transform_indices = @transform_1, window_bounds = array<i64: 32, 96>}, {transform_indices = @transform_2, window_bounds = array<i64: 1, 96>}, {transform_indices = @transform_3, window_bounds = array<i64: 16, 96>}]} {
    %c0_i32 = arith.constant 0 : i32
    %0 = arith.cmpi eq, %arg2, %c0_i32 : i32
    %1 = arith.extui %0 : i1 to i32
    %c0_i32_0 = arith.constant 0 : i32
    %2 = arith.cmpi ne, %1, %c0_i32_0 : i32
    scf.if %2 {
      %cst_10 = arith.constant 0.000000e+00 : f32
      %12 = vector.broadcast %cst_10 : f32 to vector<16x96xf32>
      %c0_11 = arith.constant 0 : index
      %c0_12 = arith.constant 0 : index
      %13 = vector.load %arg7[%c0_11, %c0_12] : memref<16x96xf32, #tpu.memory_space<vmem>>, vector<16x96xf32>
      tpu.vector_store %arg7[%c0_11, %c0_12], %12 {strides = array<i32>} : memref<16x96xf32, #tpu.memory_space<vmem>>, vector<16x96xf32>,
    } else {
    }
    %c0 = arith.constant 0 : index
    %c0_1 = arith.constant 0 : index
    %3 = vector.load %arg7[%c0, %c0_1] : memref<16x96xf32, #tpu.memory_space<vmem>>, vector<16x96xf32>
    %c0_2 = arith.constant 0 : index
    %c0_3 = arith.constant 0 : index
    %4 = vector.load %arg3[%c0_2, %c0_3] : memref<16x32xf32, #tpu.memory_space<vmem>>, vector<16x32xf32>
    %c0_4 = arith.constant 0 : index
    %c0_5 = arith.constant 0 : index
    %5 = vector.load %arg4[%c0_4, %c0_5] : memref<32x96xf32, #tpu.memory_space<vmem>>, vector<32x96xf32>
    %cst = arith.constant dense<0.000000e+00> : vector<16x96xf32>
    %6 = tpu.matmul %4, %5, %cst {dimension_numbers = #tpu.dot_dimension_numbers<[1], [0], [0], [1], [0, 0, 1, 1], [], []>} : vector<16x32xf32>, vector<32x96xf32>, vector<16x96xf32> -> vector<16x96xf32>
    %7 = arith.addf %3, %6 : vector<16x96xf32>
    %c0_6 = arith.constant 0 : index
    %c0_7 = arith.constant 0 : index
    %8 = vector.load %arg7[%c0_6, %c0_7] : memref<16x96xf32, #tpu.memory_space<vmem>>, vector<16x96xf32>
    tpu.vector_store %arg7[%c0_6, %c0_7], %7 {strides = array<i32>} : memref<16x96xf32, #tpu.memory_space<vmem>>, vector<16x96xf32>,
    %c0_i32_8 = arith.constant 0 : i32
    %9 = arith.cmpi eq, %arg2, %c0_i32_8 : i32
    %10 = arith.extui %9 : i1 to i32
    %c0_i32_9 = arith.constant 0 : i32
    %11 = arith.cmpi ne, %10, %c0_i32_9 : i32
    scf.if %11 {
      %c0_10 = arith.constant 0 : index
      %c0_11 = arith.constant 0 : index
      %12 = vector.load %arg7[%c0_10, %c0_11] : memref<16x96xf32, #tpu.memory_space<vmem>>, vector<16x96xf32>
      %c0_12 = arith.constant 0 : index
      %c0_13 = arith.constant 0 : index
      %13 = vector.load %arg5[%c0_12, %c0_13] : memref<1x96xf32, #tpu.memory_space<vmem>>, vector<1x96xf32>
      %14 = vector.broadcast %13 : vector<1x96xf32> to vector<16x96xf32>
      %15 = arith.addf %12, %14 : vector<16x96xf32>
      %c0_14 = arith.constant 0 : index
      %c0_15 = arith.constant 0 : index
      %16 = vector.load %arg6[%c0_14, %c0_15] : memref<16x96xf32, #tpu.memory_space<vmem>>, vector<16x96xf32>
      tpu.vector_store %arg6[%c0_14, %c0_15], %15 {strides = array<i32>} : memref<16x96xf32, #tpu.memory_space<vmem>>, vector<16x96xf32>,
    } else {
    }
    return
  }
  func.func @transform_0(%arg0: i32, %arg1: i32, %arg2: i32) -> (i32, i32) {
    %c0_i32 = arith.constant 0 : i32
    return %arg0, %arg2 : i32, i32
  }
  func.func @transform_1(%arg0: i32, %arg1: i32, %arg2: i32) -> (i32, i32) {
    %c0_i32 = arith.constant 0 : i32
    return %arg2, %arg1 : i32, i32
  }
  func.func @transform_2(%arg0: i32, %arg1: i32, %arg2: i32) -> (i32, i32) {
    %c0_i32 = arith.constant 0 : i32
    %c0_i32_0 = arith.constant 0 : i32
    return %c0_i32, %arg1 : i32, i32
  }
  func.func @transform_3(%arg0: i32, %arg1: i32, %arg2: i32) -> (i32, i32) {
    %c0_i32 = arith.constant 0 : i32
    return %arg0, %arg1 : i32, i32
  }
}

</mosaic_0001>

<llo_original>
// kernel: tpu_custom_call.1
$region0: #{tpu_custom_call.1}
  #allocation0 [shape = 'u32[]', space=smem, size = 0x4, offset = 0x4, fixed_abs, tag = 'smem constant byte address 0x4 - core index']
  #allocation1 [shape = 'u32[144,128]{1,0:T(1,128)}', space=vmem, size = 0x12000, scoped, tag = 'internal scratch']
  #allocation2 [shape = 'f32[16,96]{1,0:T(8,128)}', space=vmem, size = 0x2000, scoped, tag = 'scratch operand']
  %s0 = inlined_call_operand.hbm [shape: f32[16,32], index: 0, kind: input, shape index: {}]
  %s1 = inlined_call_operand.hbm [shape: f32[32,96], index: 1, kind: input, shape index: {}]
  %s2 = inlined_call_operand.vmem [shape: f32[1,96], index: 2, kind: input, shape index: {}]
  %s3 = inlined_call_operand.hbm [shape: f32[16,96], index: 3, kind: output, shape index: {}]
  %s4 = sld [smem:[#allocation0]]
  $region38: #{tpu_custom_call.1} parent=0
    _
  %s6 = ssub.s32 1, %s4
  %s7 = scalar_select 0, %s6, %s4
  $region1: #{tpu_custom_call.1} parent=0
    #allocation3 [shape = 'u8[8192]{0}', space=vmem, size = 0x2000, scoped, tag = 'input window, operand 0, single buffered']
    #allocation4 [shape = 's32[1]{0}', space=sflag, size = 0x4, scoped, tag = 'scoped memory for tpu_custom_call.1']
    #allocation5 [shape = 's32[1]{0}', space=sflag, size = 0x4, scoped, tag = 'scoped memory for tpu_custom_call.1']
    #allocation6 [shape = 'u8[16384]{0}', space=vmem, size = 0x4000, scoped, tag = 'input window, operand 1, single buffered']
    #allocation7 [shape = 's32[1]{0}', space=sflag, size = 0x4, scoped, tag = 'scoped memory for tpu_custom_call.1']
    #allocation8 [shape = 'u8[8192]{0}', space=vmem, size = 0x2000, scoped, tag = 'output window, operand 0, single buffered']
    %8 = vsyncpa [#allocation4], 0
    %9 = vsyncpa [#allocation7], 0
    %10 = vsyncpa [#allocation5], 0
    // Predicated region
    $region2: #{tpu_custom_call.1} parent=1 // pred_check
      _
    $region3: #{tpu_custom_call.1} parent=1 // pred_check_branch
      %12 = sbr.rel (0) target = $region5
    $region4: #{tpu_custom_call.1} parent=1 // pred_region
      %s14 = ssub.s32 256, 256
      %15 = vsyncadd [#allocation4], %s14
      %s16 = sshll.u32 [#allocation3], 4
      %s17 = int_to_ptr.vmem [resolvable:$true] %s16
      %22 = dma.hbm_to_vmem [thread:$0]  %s0, 256, %s17, [#allocation4], 128, 128, 8
    $region5: #{tpu_custom_call.1} parent=1 // pred_fallthru
      _
    // Predicated region
    $region6: #{tpu_custom_call.1} parent=1 // pred_check
      _
    $region7: #{tpu_custom_call.1} parent=1 // pred_check_branch
      %24 = sbr.rel (0) target = $region9
    $region8: #{tpu_custom_call.1} parent=1 // pred_region
      %s26 = ssub.s32 512, 512
      %27 = vsyncadd [#allocation7], %s26
      %s28 = sshll.u32 [#allocation6], 4
      %s29 = int_to_ptr.vmem [resolvable:$true] %s28
      %34 = dma.hbm_to_vmem [thread:$0]  %s1, 512, %s29, [#allocation7], 128, 128, 8
    $region9: #{tpu_custom_call.1} parent=1 // pred_fallthru
      _
    // Predicated region
    $region10: #{tpu_custom_call.1} parent=1 // pred_check
      _
    $region11: #{tpu_custom_call.1} parent=1 // pred_check_branch
      %36 = sbr.rel (0) target = $region13
    $region12: #{tpu_custom_call.1} parent=1 // pred_region
      _
    $region13: #{tpu_custom_call.1} parent=1 // pred_fallthru
      _
    // Predicated region
    $region14: #{tpu_custom_call.1} parent=1 // pred_check
      _
    $region15: #{tpu_custom_call.1} parent=1 // pred_check_branch
      %38 = sbr.rel (0) target = $region17
    $region16: #{tpu_custom_call.1} parent=1 // pred_region
      %39 = dma.done [#allocation4], 256
    $region17: #{tpu_custom_call.1} parent=1 // pred_fallthru
      _
    // Predicated region
    $region18: #{tpu_custom_call.1} parent=1 // pred_check
      _
    $region19: #{tpu_custom_call.1} parent=1 // pred_check_branch
      %41 = sbr.rel (0) target = $region21
    $region20: #{tpu_custom_call.1} parent=1 // pred_region
      %42 = dma.done [#allocation7], 512
    $region21: #{tpu_custom_call.1} parent=1 // pred_fallthru
      _
    %p43 = scmp.eq.s32.totalorder 0, 0
    // Predicated region
    $region22: #{tpu_custom_call.1} parent=1 // pred_check
      %p44 = pneg %p43
    $region23: #{tpu_custom_call.1} parent=1 // pred_check_branch
      %46 = sbr.rel (%p44) target = $region25
    $region24: #{tpu_custom_call.1} parent=1 // pred_region
      %vm47 = vcmask 785408
      %48 = vst.msk [vmem:[#allocation2] sm:$0xff] %vm47, 0.0
      %49 = vst.msk [vmem:[#allocation2 + $0x8] sm:$0xff] %vm47, 0.0
    $region25: #{tpu_custom_call.1} parent=1 // pred_fallthru
      _
    %v50 = vld [vmem:[#allocation2] sm:$0xff]
    %v51 = vld [vmem:[#allocation2 + $0x8] sm:$0xff]
    %v52 = vld [vmem:[#allocation3] sm:$0xff]
    %v53 = vld [vmem:[#allocation3 + $0x8] sm:$0xff]
    %v54 = vld [vmem:[#allocation6] sm:$0xff]
    %v55 = vld [vmem:[#allocation6 + $0x8] sm:$0xff]
    %v56 = vld [vmem:[#allocation6 + $0x10] sm:$0xff]
    %v57 = vld [vmem:[#allocation6 + $0x18] sm:$0xff]
    %vm58 = vcmask 261120
    %v60 = vsel %vm58, %v52, 0
    %v63 = vsel %vm58, %v53, 0
    %65 = vmatprep.subr.mxu0 0.0
    %66 = vmatpush1.msra.mxu0 %v54
    %67 = vmatprep.subr.mxu0 0.0
    %68 = vmatpush1.msra.mxu0 %v55
    %69 = vmatprep.subr.mxu0 0.0
    %70 = vmatpush1.msra.mxu0 %v56
    %71 = vmatprep.subr.mxu0 0.0
    %72 = vmatpush1.msra.mxu0 %v57
    %73 = vmatprep.subr.mxu0 0.0
    %74 = vmatpush1.msra.mxu0 0.0
    %75 = vmatprep.subr.mxu0 0.0
    %76 = vmatpush1.msra.mxu0 0.0
    %77 = vmatprep.subr.mxu0 0.0
    %78 = vmatpush1.msra.mxu0 0.0
    %79 = vmatprep.subr.mxu0 0.0
    %80 = vmatpush1.msra.mxu0 0.0
    %81 = vmatprep.subr.mxu0 0.0
    %82 = vmatpush1.msra.mxu0 0.0
    %83 = vmatprep.subr.mxu0 0.0
    %84 = vmatpush1.msra.mxu0 0.0
    %85 = vmatprep.subr.mxu0 0.0
    %86 = vmatpush1.msra.mxu0 0.0
    %87 = vmatprep.subr.mxu0 0.0
    %88 = vmatpush1.msra.mxu0 0.0
    %89 = vmatprep.subr.mxu0 0.0
    %90 = vmatpush1.msra.mxu0 0.0
    %91 = vmatprep.subr.mxu0 0.0
    %92 = vmatpush1.msra.mxu0 0.0
    %93 = vmatprep.subr.mxu0 0.0
    %94 = vmatpush1.msra.mxu0 0.0
    %95 = vmatprep.subr.mxu0 0.0
    %96 = vmatpush1.msra.mxu0 0.0
    %97 = vmatprep.subr.mxu0 0.0
    %98 = vmatpush1.msra.mxu0 0.0
    %99 = vmatprep.subr.mxu0 0.0
    %100 = vmatpush1.msra.mxu0 0.0
    %101 = vmatprep.subr.mxu0 0.0
    %102 = vmatpush1.msra.mxu0 0.0
    %103 = vmatprep.subr.mxu0 0.0
    %104 = vmatpush1.msra.mxu0 0.0
    %105 = vmatprep.subr.mxu0 0.0
    %106 = vmatpush1.msra.mxu0 0.0
    %107 = vmatprep.subr.mxu0 0.0
    %108 = vmatpush1.msra.mxu0 0.0
    %109 = vmatprep.subr.mxu0 0.0
    %110 = vmatpush1.msra.mxu0 0.0
    %111 = vmatprep.subr.mxu0 0.0
    %112 = vmatpush1.msra.mxu0 0.0
    %113 = vmatprep.subr.mxu0 0.0
    %114 = vmatpush1.msra.mxu0 0.0
    %115 = vmatprep.subr.mxu0 0.0
    %116 = vmatpush1.msra.mxu0 0.0
    %117 = vmatprep.subr.mxu0 0.0
    %118 = vmatpush1.msra.mxu0 0.0
    %119 = vmatprep.subr.mxu0 0.0
    %120 = vmatpush1.msra.mxu0 0.0
    %121 = vmatprep.subr.mxu0 0.0
    %122 = vmatpush1.msra.mxu0 0.0
    %123 = vmatprep.subr.mxu0 0.0
    %124 = vmatpush1.msra.mxu0 0.0
    %125 = vmatprep.subr.mxu0 0.0
    %126 = vmatpush1.msra.mxu0 0.0
    %127 = vmatprep.subr.mxu0 0.0
    %128 = vmatpush1.msra.mxu0 0.0
    %129 = vmatprep.mubr.f32.mxu0 0.0
    %130 = vmatmul.mubr.f32.gmra.mrb[0].mxu0 %v60
    %v131 = vpop.f32.mrb[0].mxu0
    %v132 = vadd.f32 0.0, %v131
    %v133 = vpop.f32.mrb[0].mxu0
    %134 = vmatprep.mubr.f32.mxu0 0.0
    %135 = vmatmul.mubr.f32.gmra.mrb[0].mxu0 %v63
    %v136 = vpop.f32.mrb[0].mxu0
    %v137 = vadd.f32 0.0, %v136
    %v138 = vpop.f32.mrb[0].mxu0
    %139 = vdwg.mxu0
    %v140 = vadd.f32 %v50, %v132
    %v141 = vadd.f32 %v51, %v137
    %vm142 = vcmask 785408
    %143 = vst.msk [vmem:[#allocation2] sm:$0xff] %vm142, %v140
    %144 = vst.msk [vmem:[#allocation2 + $0x8] sm:$0xff] %vm142, %v141
    // Predicated region
    $region26: #{tpu_custom_call.1} parent=1 // pred_check
      %p145 = pneg %p43
    $region27: #{tpu_custom_call.1} parent=1 // pred_check_branch
      %147 = sbr.rel (%p145) target = $region29
    $region28: #{tpu_custom_call.1} parent=1 // pred_region
      %v148 = vld [vmem:[#allocation2] sm:$0xff]
      %v149 = vld [vmem:[#allocation2 + $0x8] sm:$0xff]
      %v150 = vld [vmem:[%s2] sm:$0x1]
      %v152 = vlaneseq
      %v153 = vshrl.u32 %v152, 7
      %v154 = vsub.s32 0, %v153
      %v155 = vrot.slane %v150, %v154
      %v157 = vadd.f32 %v148, %v155
      %v158 = vadd.f32 %v149, %v155
      %159 = vst.msk [vmem:[#allocation8] sm:$0xff] %vm142, %v157
      %160 = vst.msk [vmem:[#allocation8 + $0x8] sm:$0xff] %vm142, %v158
    $region29: #{tpu_custom_call.1} parent=1 // pred_fallthru
      _
    // Predicated region
    $region30: #{tpu_custom_call.1} parent=1 // pred_check
      _
    $region31: #{tpu_custom_call.1} parent=1 // pred_check_branch
      %162 = sbr.rel (0) target = $region33
    $region32: #{tpu_custom_call.1} parent=1 // pred_region
      %s164 = ssub.s32 256, 256
      %165 = vsyncadd [#allocation5], %s164
      %s166 = sshll.u32 [#allocation8], 4
      %s167 = int_to_ptr.vmem [resolvable:$true] %s166
      %172 = dma.vmem_to_hbm [thread:$0]  %s167, 256, %s3, [#allocation5], 128, 128, 8
    $region33: #{tpu_custom_call.1} parent=1 // pred_fallthru
      _
    // Predicated region
    $region34: #{tpu_custom_call.1} parent=1 // pred_check
      _
    $region35: #{tpu_custom_call.1} parent=1 // pred_check_branch
      %174 = sbr.rel (0) target = $region37
    $region36: #{tpu_custom_call.1} parent=1 // pred_region
      %175 = dma.done [#allocation5], 256
    $region37: #{tpu_custom_call.1} parent=1 // pred_fallthru
      _
    %176 = vsyncpa [#allocation4], 1
    %177 = vsyncpa [#allocation7], 1
    %178 = vsyncpa [#allocation5], 1

</llo_original>
